<compile_context>
chip_gen: v6e
topology: v6e:2x2x1
jax: 0.10.0
libtpu: 0.0.40
codegen_flags: <defaults>
</compile_context>

<pallas_src>
import math
import numpy as np
import jax
import jax.numpy as jnp
from jax.experimental import pallas as pl
from jax.experimental.pallas import tpu as pltpu


# ----------------------------------------------------------------------------
# Activation "analysis" (Gaussian expectations), mirroring
# custome_activation_analysis_noparam('ReLU'):
#   zero_order(tau) = E[ReLU(z)],   z ~ N(0, tau^2)  = tau / sqrt(2*pi)
#   tau_square(tau) = E[ReLU(z)^2]                   = tau^2 / 2
# ----------------------------------------------------------------------------
def relu_zero_order(tau):
    return tau / math.sqrt(2.0 * math.pi)


def relu_tau_square(tau):
    return (tau * tau) / 2.0


# ----------------------------------------------------------------------------
# Fused-MLP kernel: the whole layer loop runs inside one kernel body.
# consts[i] = bias[i] * scale[i] are trace-time Python floats (no SMEM).
# Weights already carry the 1/sqrt(width) scale (scale > 0 so it commutes
# with ReLU).
# ----------------------------------------------------------------------------
def make_fused_mlp_kernel(consts):
    n_layers = len(consts)

    def kernel(*refs):
        x_ref = refs[0]
        w_refs = refs[1:1 + n_layers]
        o_ref = refs[1 + n_layers]
        h = x_ref[...]
        for i in range(n_layers):
            # MXU matmul (scale folded into the weight), VPU ReLU,
            # then subtract the compile-time constant bias*scale.
            h = jnp.dot(h, w_refs[i][...], preferred_element_type=jnp.float32)
            h = jnp.maximum(h, 0.0) - consts[i]
        o_ref[...] = h

    return kernel


# ----------------------------------------------------------------------------
# Model wrapper, mirroring My_Model.__init__ / forward
# ----------------------------------------------------------------------------
class MyModelPallas:
    def __init__(self, layer_num, input_num, weight_num_list, activation_list,
                 tau_zero, key, batch_block=256):
        assert layer_num == len(weight_num_list) == len(activation_list)
        self.layer_num = layer_num
        self.input_num = input_num
        self.weight_num_list = list(weight_num_list)
        self.batch_block = batch_block

        # --- per-layer bias from activation analysis (ReLU closed forms) ---
        # TODO(synk): only the 'ReLU' branch of the activation analysis is
        # implemented; other activation names would need their own
        # zero_order / tau_square Gaussian expectations.
        self.bias = []
        tau_last = tau_zero
        for i in range(layer_num):
            assert activation_list[i]['name'] == 'ReLU'
            self.bias.append(float(relu_zero_order(tau_last)))
            tau_last = float(np.sqrt(relu_tau_square(tau_last)))
        self.scales = [1.0 / math.sqrt(n) for n in self.weight_num_list]
        # The scale->weight fold (ReLU(x(W*s)) - b*s == s*(ReLU(xW) - b))
        # requires s > 0; assert so a future change can't silently break it.
        assert all(s > 0.0 for s in self.scales)

        # --- deterministic weight init mirroring nn.Linear(bias=False) ------
        # nn.Linear stores W as (out, in); we keep the transposed (in, out).
        self.weights_t = []      # unpadded, unscaled (reference copy)
        fan_in = input_num
        keys = jax.random.split(key, layer_num)
        for i in range(layer_num):
            out = weight_num_list[i]
            bound = 1.0 / math.sqrt(fan_in)
            w = jax.random.uniform(keys[i], (out, fan_in), dtype=jnp.float32,
                                   minval=-bound, maxval=bound)
            self.weights_t.append(jnp.transpose(w))  # (in, out)
            fan_in = out

        # --- fold 1/sqrt(width) into weights; NO padding (true shapes) ------
        self.weights_folded = [self.weights_t[i] * self.scales[i]
                               for i in range(layer_num)]
        self.consts = tuple(b * s for b, s in zip(self.bias, self.scales))

        kernel = make_fused_mlp_kernel(self.consts)
        w_shapes = [tuple(w.shape) for w in self.weights_folded]
        out_true = weight_num_list[-1]
        in_true = input_num
        bm = batch_block

        def forward(x, *weights):
            x = x.astype(jnp.float32)
            B = x.shape[0]

            if B >= bm and B % bm == 0:
                # Large-batch path: grid over batch, weights stay VMEM-resident
                # (constant index_maps); 'parallel' lets v7x use both TCs.
                in_specs = [pl.BlockSpec((bm, in_true), lambda i: (i, 0))]
                for shp in w_shapes:
                    in_specs.append(pl.BlockSpec(shp, lambda i: (0, 0)))
                return pl.pallas_call(
                    kernel,
                    out_shape=jax.ShapeDtypeStruct((B, out_true), jnp.float32),
                    grid=(B // bm,),
                    in_specs=in_specs,
                    out_specs=pl.BlockSpec((bm, out_true), lambda i: (i, 0)),
                    compiler_params=pltpu.CompilerParams(
                        dimension_semantics=("parallel",)),
                )(x, *weights)

            # Small-batch path: gridless, full-extent blocks (exempt from the
            # (8,128) rule), single launch, no pad / slice ops around it.
            in_specs = [pl.BlockSpec((B, in_true), lambda: (0, 0))]
            for shp in w_shapes:
                in_specs.append(pl.BlockSpec(shp, lambda: (0, 0)))
            return pl.pallas_call(
                kernel,
                out_shape=jax.ShapeDtypeStruct((B, out_true), jnp.float32),
                in_specs=in_specs,
                out_specs=pl.BlockSpec((B, out_true), lambda: (0, 0)),
            )(x, *weights)

        # single jitted executable: just the fused kernel
        self._forward = jax.jit(forward)

    def __call__(self, X):
        return self._forward(X, *self.weights_folded)


if __name__ == "__main__":
    key = jax.random.PRNGKey(0)
    k_x, k_w = jax.random.split(key)

    # Small shapes consistent with the module's MLP forward.
    batch = 8
    input_num = 32
    weight_num_list = [64, 32, 16]
    activation_list = [{'name': 'ReLU', 'args': None}] * 3
    layer_num = 3
    tau_zero = 1.0

    model = MyModelPallas(layer_num, input_num, weight_num_list,
                          activation_list, tau_zero, k_w)

    x = jax.random.normal(k_x, (batch, input_num), dtype=jnp.float32)
    out = model(x)
    out = jax.block_until_ready(out)

    # Plain-JAX reference of the original (unfolded) math.
    ref = x.astype(jnp.float32)
    for i in range(layer_num):
        ref = jnp.maximum(ref @ model.weights_t[i], 0.0)
        ref = (ref - model.bias[i]) * model.scales[i]

    assert out.shape == (batch, weight_num_list[-1])
    np.testing.assert_allclose(np.asarray(out), np.asarray(ref),
                               rtol=1e-5, atol=1e-5)

    print("KERNEL_OK")
</pallas_src>

<mosaic_0001>
module attributes {stable_mosaic.version = 11 : i64} {
  func.func @kernel(%arg0: memref<8x32xf32, #tpu.memory_space<vmem>>, %arg1: memref<32x64xf32, #tpu.memory_space<vmem>>, %arg2: memref<64x32xf32, #tpu.memory_space<vmem>>, %arg3: memref<32x16xf32, #tpu.memory_space<vmem>>, %arg4: memref<8x16xf32, #tpu.memory_space<vmem>>) attributes {dimension_semantics = [], scalar_prefetch = 0 : i64, scratch_operands = 0 : i64, tpu.core_type = #tpu.core_type<tc>} {
    %c0 = arith.constant 0 : index
    %c0_0 = arith.constant 0 : index
    %0 = vector.load %arg0[%c0, %c0_0] : memref<8x32xf32, #tpu.memory_space<vmem>>, vector<8x32xf32>
    %c0_1 = arith.constant 0 : index
    %c0_2 = arith.constant 0 : index
    %1 = vector.load %arg1[%c0_1, %c0_2] : memref<32x64xf32, #tpu.memory_space<vmem>>, vector<32x64xf32>
    %cst = arith.constant dense<0.000000e+00> : vector<8x64xf32>
    %2 = tpu.matmul %0, %1, %cst {dimension_numbers = #tpu.dot_dimension_numbers<[1], [0], [0], [1], [0, 0, 1, 1], [], []>} : vector<8x32xf32>, vector<32x64xf32>, vector<8x64xf32> -> vector<8x64xf32>
    %cst_3 = arith.constant 0.000000e+00 : f32
    %3 = vector.broadcast %cst_3 : f32 to vector<8x64xf32>
    %4 = arith.maximumf %2, %3 : vector<8x64xf32>
    %cst_4 = arith.constant 0.0498677865 : f32
    %5 = vector.broadcast %cst_4 : f32 to vector<8x64xf32>
    %6 = arith.subf %4, %5 : vector<8x64xf32>
    %c0_5 = arith.constant 0 : index
    %c0_6 = arith.constant 0 : index
    %7 = vector.load %arg2[%c0_5, %c0_6] : memref<64x32xf32, #tpu.memory_space<vmem>>, vector<64x32xf32>
    %cst_7 = arith.constant dense<0.000000e+00> : vector<8x32xf32>
    %8 = tpu.matmul %6, %7, %cst_7 {dimension_numbers = #tpu.dot_dimension_numbers<[1], [0], [0], [1], [0, 0, 1, 1], [], []>} : vector<8x64xf32>, vector<64x32xf32>, vector<8x32xf32> -> vector<8x32xf32>
    %cst_8 = arith.constant 0.000000e+00 : f32
    %9 = vector.broadcast %cst_8 : f32 to vector<8x32xf32>
    %10 = arith.maximumf %8, %9 : vector<8x32xf32>
    %cst_9 = arith.constant 0.0498677865 : f32
    %11 = vector.broadcast %cst_9 : f32 to vector<8x32xf32>
    %12 = arith.subf %10, %11 : vector<8x32xf32>
    %c0_10 = arith.constant 0 : index
    %c0_11 = arith.constant 0 : index
    %13 = vector.load %arg3[%c0_10, %c0_11] : memref<32x16xf32, #tpu.memory_space<vmem>>, vector<32x16xf32>
    %cst_12 = arith.constant dense<0.000000e+00> : vector<8x16xf32>
    %14 = tpu.matmul %12, %13, %cst_12 {dimension_numbers = #tpu.dot_dimension_numbers<[1], [0], [0], [1], [0, 0, 1, 1], [], []>} : vector<8x32xf32>, vector<32x16xf32>, vector<8x16xf32> -> vector<8x16xf32>
    %cst_13 = arith.constant 0.000000e+00 : f32
    %15 = vector.broadcast %cst_13 : f32 to vector<8x16xf32>
    %16 = arith.maximumf %14, %15 : vector<8x16xf32>
    %cst_14 = arith.constant 0.0498677865 : f32
    %17 = vector.broadcast %cst_14 : f32 to vector<8x16xf32>
    %18 = arith.subf %16, %17 : vector<8x16xf32>
    %c0_15 = arith.constant 0 : index
    %c0_16 = arith.constant 0 : index
    %19 = vector.load %arg4[%c0_15, %c0_16] : memref<8x16xf32, #tpu.memory_space<vmem>>, vector<8x16xf32>
    tpu.vector_store %arg4[%c0_15, %c0_16], %18 {strides = array<i32>} : memref<8x16xf32, #tpu.memory_space<vmem>>, vector<8x16xf32>,
    return
  }
}

</mosaic_0001>

<llo_original>
// kernel: forward.1
$region0: #{forward.1}
  #allocation0 [shape = 'u32[]', space=smem, size = 0x4, offset = 0x4, fixed_abs, tag = 'smem constant byte address 0x4 - core index']
  #allocation1 [shape = 'u32[144,128]{1,0:T(1,128)}', space=vmem, size = 0x12000, scoped, tag = 'internal scratch']
  %s0 = inlined_call_operand.vmem [shape: f32[8,32], index: 0, kind: input, shape index: {}]
  %s1 = inlined_call_operand.vmem [shape: f32[32,64], index: 1, kind: input, shape index: {}]
  %s2 = inlined_call_operand.vmem [shape: f32[64,32], index: 2, kind: input, shape index: {}]
  %s3 = inlined_call_operand.vmem [shape: f32[32,16], index: 3, kind: input, shape index: {}]
  %s4 = inlined_call_operand.hbm [shape: f32[8,16], index: 4, kind: output, shape index: {}]
  %s5 = sld [smem:[#allocation0]]
  $region26: #{forward.1} parent=0
    _
  %s7 = ssub.s32 1, %s5
  %s8 = scalar_select 0, %s7, %s5
  $region1: #{forward.1} parent=0
    #allocation2 [shape = 'u8[4096]{0}', space=vmem, size = 0x1000, scoped, tag = 'output window, operand 0, single buffered']
    #allocation3 [shape = 's32[1]{0}', space=sflag, size = 0x4, scoped, tag = 'scoped memory for forward.1']
    %9 = vsyncpa [#allocation3], 0
    // Predicated region
    $region2: #{forward.1} parent=1 // pred_check
      _
    $region3: #{forward.1} parent=1 // pred_check_branch
      %11 = sbr.rel (0) target = $region5
    $region4: #{forward.1} parent=1 // pred_region
      _
    $region5: #{forward.1} parent=1 // pred_fallthru
      _
    // Predicated region
    $region6: #{forward.1} parent=1 // pred_check
      _
    $region7: #{forward.1} parent=1 // pred_check_branch
      %13 = sbr.rel (0) target = $region9
    $region8: #{forward.1} parent=1 // pred_region
      _
    $region9: #{forward.1} parent=1 // pred_fallthru
      _
    // Predicated region
    $region10: #{forward.1} parent=1 // pred_check
      _
    $region11: #{forward.1} parent=1 // pred_check_branch
      %15 = sbr.rel (0) target = $region13
    $region12: #{forward.1} parent=1 // pred_region
      _
    $region13: #{forward.1} parent=1 // pred_fallthru
      _
    // Predicated region
    $region14: #{forward.1} parent=1 // pred_check
      _
    $region15: #{forward.1} parent=1 // pred_check_branch
      %17 = sbr.rel (0) target = $region17
    $region16: #{forward.1} parent=1 // pred_region
      _
    $region17: #{forward.1} parent=1 // pred_fallthru
      _
    %v18 = vld [vmem:[%s0] sm:$0xff]
    %v19 = vld [vmem:[%s1] sm:$0xff]
    %v20 = vld [vmem:[%s1 + $0x8] sm:$0xff]
    %v21 = vld [vmem:[%s1 + $0x10] sm:$0xff]
    %v22 = vld [vmem:[%s1 + $0x18] sm:$0xff]
    %vm23 = vcmask 261120
    %v25 = vsel %vm23, %v18, 0
    %27 = vmatprep.subr.mxu0 0.0
    %28 = vmatpush1.msra.mxu0 0.0
    %29 = vmatprep.subr.mxu0 0.0
    %30 = vmatpush1.msra.mxu0 0.0
    %31 = vmatprep.subr.mxu0 0.0
    %32 = vmatpush1.msra.mxu0 0.0
    %33 = vmatprep.subr.mxu0 0.0
    %34 = vmatpush1.msra.mxu0 0.0
    %35 = vmatprep.subr.mxu0 0.0
    %36 = vmatpush1.msra.mxu0 0.0
    %37 = vmatprep.subr.mxu0 0.0
    %38 = vmatpush1.msra.mxu0 0.0
    %39 = vmatprep.subr.mxu0 0.0
    %40 = vmatpush1.msra.mxu0 0.0
    %41 = vmatprep.subr.mxu0 0.0
    %42 = vmatpush1.msra.mxu0 0.0
    %43 = vmatprep.subr.mxu0 0.0
    %44 = vmatpush1.msra.mxu0 0.0
    %45 = vmatprep.subr.mxu0 0.0
    %46 = vmatpush1.msra.mxu0 0.0
    %47 = vmatprep.subr.mxu0 0.0
    %48 = vmatpush1.msra.mxu0 0.0
    %49 = vmatprep.subr.mxu0 0.0
    %50 = vmatpush1.msra.mxu0 0.0
    %51 = vmatprep.subr.mxu0 0.0
    %52 = vmatpush1.msra.mxu0 %v22
    %53 = vmatprep.subr.mxu0 0.0
    %54 = vmatpush1.msra.mxu0 %v21
    %55 = vmatprep.subr.mxu0 0.0
    %56 = vmatpush1.msra.mxu0 %v20
    %57 = vmatprep.subr.mxu0 0.0
    %58 = vmatpush1.msra.mxu0 %v19
    %59 = vmatprep.subr.mxu0 0.0
    %60 = vmatpush2.msra.mxu0 0.0
    %61 = vmatprep.subr.mxu0 0.0
    %62 = vmatpush2.msra.mxu0 0.0
    %63 = vmatprep.subr.mxu0 0.0
    %64 = vmatpush2.msra.mxu0 0.0
    %65 = vmatprep.subr.mxu0 0.0
    %66 = vmatpush2.msra.mxu0 0.0
    %67 = vmatprep.subr.mxu0 0.0
    %68 = vmatpush2.msra.mxu0 0.0
    %69 = vmatprep.subr.mxu0 0.0
    %70 = vmatpush2.msra.mxu0 0.0
    %71 = vmatprep.subr.mxu0 0.0
    %72 = vmatpush2.msra.mxu0 0.0
    %73 = vmatprep.subr.mxu0 0.0
    %74 = vmatpush2.msra.mxu0 0.0
    %75 = vmatprep.subr.mxu0 0.0
    %76 = vmatpush2.msra.mxu0 0.0
    %77 = vmatprep.subr.mxu0 0.0
    %78 = vmatpush2.msra.mxu0 0.0
    %79 = vmatprep.subr.mxu0 0.0
    %80 = vmatpush2.msra.mxu0 0.0
    %81 = vmatprep.subr.mxu0 0.0
    %82 = vmatpush2.msra.mxu0 0.0
    %83 = vmatprep.subr.mxu0 0.0
    %84 = vmatpush2.msra.mxu0 0.0
    %85 = vmatprep.subr.mxu0 0.0
    %86 = vmatpush2.msra.mxu0 0.0
    %87 = vmatprep.subr.mxu0 0.0
    %88 = vmatpush2.msra.mxu0 0.0
    %89 = vmatprep.subr.mxu0 0.0
    %90 = vmatpush2.msra.mxu0 0.0
    %91 = vmatprep.mubr.f32.mxu0 0.0
    %92 = vmatmul.mubr.f32.gmra.mxu0 %v25
    %v93 = vpop.f32.mrf.mxu0
    %v94 = vadd.f32 0.0, %v93
    %v95 = vpop.f32.mrf.mxu0
    %96 = vdwg.mxu0
    %v97 = vmax.f32 %v94, 0.0
    %v98 = vsub.f32 %v97, 0.049867786
    %v99 = vld [vmem:[%s2] sm:$0xff]
    %v100 = vld [vmem:[%s2 + $0x8] sm:$0xff]
    %v101 = vld [vmem:[%s2 + $0x10] sm:$0xff]
    %v102 = vld [vmem:[%s2 + $0x18] sm:$0xff]
    %v103 = vld [vmem:[%s2 + $0x20] sm:$0xff]
    %v104 = vld [vmem:[%s2 + $0x28] sm:$0xff]
    %v105 = vld [vmem:[%s2 + $0x30] sm:$0xff]
    %v106 = vld [vmem:[%s2 + $0x38] sm:$0xff]
    %vm107 = vcmask 523264
    %v109 = vsel %vm107, %v98, 0
    %111 = vmatprep.subr.mxu0 0.0
    %112 = vmatpush1.msra.mxu0 0.0
    %113 = vmatprep.subr.mxu0 0.0
    %114 = vmatpush1.msra.mxu0 0.0
    %115 = vmatprep.subr.mxu0 0.0
    %116 = vmatpush1.msra.mxu0 0.0
    %117 = vmatprep.subr.mxu0 0.0
    %118 = vmatpush1.msra.mxu0 0.0
    %119 = vmatprep.subr.mxu0 0.0
    %120 = vmatpush1.msra.mxu0 0.0
    %121 = vmatprep.subr.mxu0 0.0
    %122 = vmatpush1.msra.mxu0 0.0
    %123 = vmatprep.subr.mxu0 0.0
    %124 = vmatpush1.msra.mxu0 0.0
    %125 = vmatprep.subr.mxu0 0.0
    %126 = vmatpush1.msra.mxu0 0.0
    %127 = vmatprep.subr.mxu0 0.0
    %128 = vmatpush1.msra.mxu0 %v106
    %129 = vmatprep.subr.mxu0 0.0
    %130 = vmatpush1.msra.mxu0 %v105
    %131 = vmatprep.subr.mxu0 0.0
    %132 = vmatpush1.msra.mxu0 %v104
    %133 = vmatprep.subr.mxu0 0.0
    %134 = vmatpush1.msra.mxu0 %v103
    %135 = vmatprep.subr.mxu0 0.0
    %136 = vmatpush1.msra.mxu0 %v102
    %137 = vmatprep.subr.mxu0 0.0
    %138 = vmatpush1.msra.mxu0 %v101
    %139 = vmatprep.subr.mxu0 0.0
    %140 = vmatpush1.msra.mxu0 %v100
    %141 = vmatprep.subr.mxu0 0.0
    %142 = vmatpush1.msra.mxu0 %v99
    %143 = vmatprep.subr.mxu0 0.0
    %144 = vmatpush2.msra.mxu0 0.0
    %145 = vmatprep.subr.mxu0 0.0
    %146 = vmatpush2.msra.mxu0 0.0
    %147 = vmatprep.subr.mxu0 0.0
    %148 = vmatpush2.msra.mxu0 0.0
    %149 = vmatprep.subr.mxu0 0.0
    %150 = vmatpush2.msra.mxu0 0.0
    %151 = vmatprep.subr.mxu0 0.0
    %152 = vmatpush2.msra.mxu0 0.0
    %153 = vmatprep.subr.mxu0 0.0
    %154 = vmatpush2.msra.mxu0 0.0
    %155 = vmatprep.subr.mxu0 0.0
    %156 = vmatpush2.msra.mxu0 0.0
    %157 = vmatprep.subr.mxu0 0.0
    %158 = vmatpush2.msra.mxu0 0.0
    %159 = vmatprep.subr.mxu0 0.0
    %160 = vmatpush2.msra.mxu0 0.0
    %161 = vmatprep.subr.mxu0 0.0
    %162 = vmatpush2.msra.mxu0 0.0
    %163 = vmatprep.subr.mxu0 0.0
    %164 = vmatpush2.msra.mxu0 0.0
    %165 = vmatprep.subr.mxu0 0.0
    %166 = vmatpush2.msra.mxu0 0.0
    %167 = vmatprep.subr.mxu0 0.0
    %168 = vmatpush2.msra.mxu0 0.0
    %169 = vmatprep.subr.mxu0 0.0
    %170 = vmatpush2.msra.mxu0 0.0
    %171 = vmatprep.subr.mxu0 0.0
    %172 = vmatpush2.msra.mxu0 0.0
    %173 = vmatprep.subr.mxu0 0.0
    %174 = vmatpush2.msra.mxu0 0.0
    %175 = vmatprep.mubr.f32.mxu0 0.0
    %176 = vmatmul.mubr.f32.gmra.mxu0 %v109
    %v177 = vpop.f32.mrf.mxu0
    %v178 = vadd.f32 0.0, %v177
    %v179 = vpop.f32.mrf.mxu0
    %180 = vdwg.mxu0
    %v181 = vmax.f32 %v178, 0.0
    %v182 = vsub.f32 %v181, 0.049867786
    %v183 = vld [vmem:[%s3] sm:$0xff]
    %v184 = vld [vmem:[%s3 + $0x8] sm:$0xff]
    %v185 = vld [vmem:[%s3 + $0x10] sm:$0xff]
    %v186 = vld [vmem:[%s3 + $0x18] sm:$0xff]
    %v188 = vsel %vm23, %v182, 0
    %190 = vmatprep.subr.mxu0 0.0
    %191 = vmatpush1.msra.mxu0 0.0
    %192 = vmatprep.subr.mxu0 0.0
    %193 = vmatpush1.msra.mxu0 0.0
    %194 = vmatprep.subr.mxu0 0.0
    %195 = vmatpush1.msra.mxu0 0.0
    %196 = vmatprep.subr.mxu0 0.0
    %197 = vmatpush1.msra.mxu0 0.0
    %198 = vmatprep.subr.mxu0 0.0
    %199 = vmatpush1.msra.mxu0 0.0
    %200 = vmatprep.subr.mxu0 0.0
    %201 = vmatpush1.msra.mxu0 0.0
    %202 = vmatprep.subr.mxu0 0.0
    %203 = vmatpush1.msra.mxu0 0.0
    %204 = vmatprep.subr.mxu0 0.0
    %205 = vmatpush1.msra.mxu0 0.0
    %206 = vmatprep.subr.mxu0 0.0
    %207 = vmatpush1.msra.mxu0 0.0
    %208 = vmatprep.subr.mxu0 0.0
    %209 = vmatpush1.msra.mxu0 0.0
    %210 = vmatprep.subr.mxu0 0.0
    %211 = vmatpush1.msra.mxu0 0.0
    %212 = vmatprep.subr.mxu0 0.0
    %213 = vmatpush1.msra.mxu0 0.0
    %214 = vmatprep.subr.mxu0 0.0
    %215 = vmatpush1.msra.mxu0 %v186
    %216 = vmatprep.subr.mxu0 0.0
    %217 = vmatpush1.msra.mxu0 %v185
    %218 = vmatprep.subr.mxu0 0.0
    %219 = vmatpush1.msra.mxu0 %v184
    %220 = vmatprep.subr.mxu0 0.0
    %221 = vmatpush1.msra.mxu0 %v183
    %222 = vmatprep.subr.mxu0 0.0
    %223 = vmatpush2.msra.mxu0 0.0
    %224 = vmatprep.subr.mxu0 0.0
    %225 = vmatpush2.msra.mxu0 0.0
    %226 = vmatprep.subr.mxu0 0.0
    %227 = vmatpush2.msra.mxu0 0.0
    %228 = vmatprep.subr.mxu0 0.0
    %229 = vmatpush2.msra.mxu0 0.0
    %230 = vmatprep.subr.mxu0 0.0
    %231 = vmatpush2.msra.mxu0 0.0
    %232 = vmatprep.subr.mxu0 0.0
    %233 = vmatpush2.msra.mxu0 0.0
    %234 = vmatprep.subr.mxu0 0.0
    %235 = vmatpush2.msra.mxu0 0.0
    %236 = vmatprep.subr.mxu0 0.0
    %237 = vmatpush2.msra.mxu0 0.0
    %238 = vmatprep.subr.mxu0 0.0
    %239 = vmatpush2.msra.mxu0 0.0
    %240 = vmatprep.subr.mxu0 0.0
    %241 = vmatpush2.msra.mxu0 0.0
    %242 = vmatprep.subr.mxu0 0.0
    %243 = vmatpush2.msra.mxu0 0.0
    %244 = vmatprep.subr.mxu0 0.0
    %245 = vmatpush2.msra.mxu0 0.0
    %246 = vmatprep.subr.mxu0 0.0
    %247 = vmatpush2.msra.mxu0 0.0
    %248 = vmatprep.subr.mxu0 0.0
    %249 = vmatpush2.msra.mxu0 0.0
    %250 = vmatprep.subr.mxu0 0.0
    %251 = vmatpush2.msra.mxu0 0.0
    %252 = vmatprep.subr.mxu0 0.0
    %253 = vmatpush2.msra.mxu0 0.0
    %254 = vmatprep.mubr.f32.mxu0 0.0
    %255 = vmatmul.mubr.f32.gmra.mxu0 %v188
    %v256 = vpop.f32.mrf.mxu0
    %v257 = vadd.f32 0.0, %v256
    %v258 = vpop.f32.mrf.mxu0
    %259 = vdwg.mxu0
    %v260 = vmax.f32 %v257, 0.0
    %v261 = vsub.f32 %v260, 0.049867786
    %vm262 = vcmask 130048
    %263 = vst.msk [vmem:[#allocation2] sm:$0xff] %vm262, %v261
    // Predicated region
    $region18: #{forward.1} parent=1 // pred_check
      _
    $region19: #{forward.1} parent=1 // pred_check_branch
      %265 = sbr.rel (0) target = $region21
    $region20: #{forward.1} parent=1 // pred_region
      %s267 = ssub.s32 128, 128
      %268 = vsyncadd [#allocation3], %s267
      %s270 = sshll.u32 [#allocation2], 4
      %s271 = int_to_ptr.vmem [resolvable:$true] %s270
      %273 = dma.vmem_to_hbm [thread:$0]  %s271, 128, %s4, [#allocation3]
    $region21: #{forward.1} parent=1 // pred_fallthru
      _
    // Predicated region
    $region22: #{forward.1} parent=1 // pred_check
      _
    $region23: #{forward.1} parent=1 // pred_check_branch
      %275 = sbr.rel (0) target = $region25
    $region24: #{forward.1} parent=1 // pred_region
      %276 = dma.done [#allocation3], 128
    $region25: #{forward.1} parent=1 // pred_fallthru
      _
    %277 = vsyncpa [#allocation3], 1

</llo_original>
